<compile_context>
chip_gen: v7x
topology: tpu7x:2x2x1
jax: 0.10.0
libtpu: 0.0.40
codegen_flags: <defaults>
</compile_context>

<pallas_src>
import math

import jax
import jax.numpy as jnp
from jax import lax
from jax.experimental import pallas as pl
from jax.experimental.pallas import tpu as pltpu

LN_EPS = 1e-12  # BERT default layer_norm_eps
_INV_SQRT2 = 1.0 / math.sqrt(2.0)


def _round_up(x, m):
    return (x + m - 1) // m * m


def _cdiv(a, b):
    return (a + b - 1) // b


def _lm_head_kernel(x_ref, w1_ref, b1_ref, g_ref, beta_ref, wd_ref, vb_ref,
                    o_ref, h_ref):
    # Grid: i = row tile (parallel), j = vocab tile (sequential / arbitrary).
    @pl.when(pl.program_id(1) == 0)
    def _():
        # dense: hidden -> hidden (bf16 operands, f32 accumulation on the MXU)
        h = jnp.dot(x_ref[...], w1_ref[...], preferred_element_type=jnp.float32)
        h = h + b1_ref[...].astype(jnp.float32)

        # exact (erf) gelu, matching the torch reference (f32 math)
        h = h * 0.5 * (1.0 + lax.erf(h * _INV_SQRT2))

        # LayerNorm over the hidden dim (f32 math)
        mean = jnp.mean(h, axis=-1, keepdims=True)
        var = jnp.mean((h - mean) * (h - mean), axis=-1, keepdims=True)
        h = (h - mean) * lax.rsqrt(var + LN_EPS)
        h = h * g_ref[...].astype(jnp.float32) + beta_ref[...].astype(jnp.float32)

        # cache the post-LN activation for all vocab tiles of this row tile
        h_ref[...] = h.astype(h_ref.dtype)

    # decoder: hidden -> vocab tile, plus vocab bias (streamed weight slab)
    out = jnp.dot(h_ref[...], wd_ref[...], preferred_element_type=jnp.float32)
    out = out + vb_ref[...].astype(jnp.float32)
    o_ref[...] = out.astype(o_ref.dtype)


def prepare_params(raw_params, *, matmul_dtype=jnp.bfloat16):
    """One-time (init-time) conversion to kernel-ready layout.

    Casts the two matmul weights to bf16 and pads the vocab axis of the
    decoder weight / bias to a multiple of 128, so the per-call path does no
    weight casting or padding (the H x V decoder weight is the largest array
    in the problem).  LayerNorm / bias vectors stay f32.
    """
    V = raw_params["decoder_w"].shape[1]
    Vp = _round_up(V, 128)
    decoder_w = raw_params["decoder_w"].astype(matmul_dtype)
    decoder_b = raw_params["decoder_bias"].astype(jnp.float32)
    if Vp != V:
        decoder_w = jnp.pad(decoder_w, ((0, 0), (0, Vp - V)))
        decoder_b = jnp.pad(decoder_b, ((0, 0), (0, Vp - V)))
    return {
        "dense_w": raw_params["dense_w"].astype(matmul_dtype),
        "dense_b": raw_params["dense_b"].astype(jnp.float32),
        "ln_gamma": raw_params["ln_gamma"].astype(jnp.float32),
        "ln_beta": raw_params["ln_beta"].astype(jnp.float32),
        "decoder_w": decoder_w,        # [H, Vp], bf16, padded once
        "decoder_bias": decoder_b,     # [1, Vp], f32, padded once
    }


def language_head(hidden_states, params, *, vocab_size=None, tm=512, tn=2048,
                  out_dtype=jnp.bfloat16, vmem_limit_bytes=48 * 1024 * 1024):
    """hidden_states: [B, S, H]; params from `prepare_params`.

    Returns logits [B, S, vocab_size] in `out_dtype` (default bf16; f32
    accumulation inside the kernel).  Works for arbitrary B*S and vocab size:
    partial last row / vocab blocks are handled with masked stores, so there is
    no output padding and no post-kernel slice copy.

    Tile guidance: tm=512 works on all generations (v5e/v6e/v7x); tm=1024
    helps v6e reach its compute roofline and still fits v7x's 64 MiB VMEM
    (~25 MiB working set at tn=2048, bf16 logits).  vmem_limit_bytes=48 MiB is
    safe everywhere; raise toward ~100 MiB on v5e/v6e only if tiles grow.
    """
    B, S, H = hidden_states.shape
    M = B * S
    Vp = params["decoder_w"].shape[1]
    V = Vp if vocab_size is None else vocab_size
    matmul_dtype = params["decoder_w"].dtype

    # Row tile: multiple of 16 (bf16 sublane packing); capped so that, when M
    # allows it, there are >= 2 row tiles for the megacore-parallel row axis.
    tm_eff = min(_round_up(tm, 16),
                 _round_up(M, 16),
                 _round_up(max(_cdiv(M, 2), 16), 16))
    Mp = _round_up(M, tm_eff)
    # Vocab tile: multiple of 128 (lane-dense stores). No padding of V itself.
    tn_eff = min(_round_up(tn, 128), _round_up(V, 128))

    # Only the (small) activation is touched per call: bf16 cast + row pad.
    x2d = hidden_states.reshape(M, H).astype(matmul_dtype)
    if Mp != M:
        x2d = jnp.pad(x2d, ((0, Mp - M), (0, 0)))

    grid = (Mp // tm_eff, _cdiv(V, tn_eff))

    out = pl.pallas_call(
        _lm_head_kernel,
        out_shape=jax.ShapeDtypeStruct((M, V), out_dtype),
        grid_spec=pltpu.PrefetchScalarGridSpec(
            num_scalar_prefetch=0,
            grid=grid,
            in_specs=[
                pl.BlockSpec((tm_eff, H), lambda i, j: (i, 0)),   # x row tile
                pl.BlockSpec((H, H), lambda i, j: (0, 0)),        # dense weight (resident)
                pl.BlockSpec((1, H), lambda i, j: (0, 0)),        # dense bias
                pl.BlockSpec((1, H), lambda i, j: (0, 0)),        # LN gamma
                pl.BlockSpec((1, H), lambda i, j: (0, 0)),        # LN beta
                pl.BlockSpec((H, tn_eff), lambda i, j: (0, j)),   # decoder weight slab (streamed)
                pl.BlockSpec((1, tn_eff), lambda i, j: (0, j)),   # vocab bias slab
            ],
            out_specs=pl.BlockSpec((tm_eff, tn_eff), lambda i, j: (i, j)),
            scratch_shapes=[pltpu.VMEM((tm_eff, H), matmul_dtype)],  # cached post-LN h
        ),
        compiler_params=pltpu.CompilerParams(
            dimension_semantics=("parallel", "arbitrary"),
            vmem_limit_bytes=vmem_limit_bytes,
        ),
    )(
        x2d,
        params["dense_w"],
        params["dense_b"],
        params["ln_gamma"],
        params["ln_beta"],
        params["decoder_w"],
        params["decoder_bias"],
    )
    return out.reshape(B, S, V)


def init_params(key, hidden_size, vocab_size):
    """Raw f32 parameters, weights stored as [in, out] == torch weight.T."""
    k1, k2, k3 = jax.random.split(key, 3)
    scale = 0.02
    return {
        "dense_w": scale * jax.random.normal(k1, (hidden_size, hidden_size), jnp.float32),
        "dense_b": scale * jax.random.normal(k2, (1, hidden_size), jnp.float32),
        "ln_gamma": jnp.ones((1, hidden_size), jnp.float32),
        "ln_beta": jnp.zeros((1, hidden_size), jnp.float32),
        "decoder_w": scale * jax.random.normal(k3, (hidden_size, vocab_size), jnp.float32),
        # self.bias in BertLMPredictionHead is initialised to zeros
        "decoder_bias": jnp.zeros((1, vocab_size), jnp.float32),
    }


def _reference(hidden_states, raw_params, matmul_dtype=jnp.bfloat16):
    """Pure-JAX reference using the same bf16-matmul / f32-accumulate recipe."""
    x = hidden_states.astype(matmul_dtype)
    h = jnp.dot(x, raw_params["dense_w"].astype(matmul_dtype),
                preferred_element_type=jnp.float32) + raw_params["dense_b"][0]
    h = h * 0.5 * (1.0 + lax.erf(h * _INV_SQRT2))
    mean = jnp.mean(h, axis=-1, keepdims=True)
    var = jnp.mean((h - mean) ** 2, axis=-1, keepdims=True)
    h = (h - mean) / jnp.sqrt(var + LN_EPS)
    h = h * raw_params["ln_gamma"][0] + raw_params["ln_beta"][0]
    h = h.astype(matmul_dtype)
    return jnp.dot(h, raw_params["decoder_w"].astype(matmul_dtype),
                   preferred_element_type=jnp.float32) + raw_params["decoder_bias"][0]


if __name__ == "__main__":
    # Small shapes, chosen so the test exercises the real tiled path:
    # 2 row tiles (j==0 caching across row tiles), 2 vocab tiles with a ragged
    # last vocab block (V=250 -> masked partial store) and an init-time-padded
    # decoder weight (Vp=256).
    B, S, H, V = 2, 16, 128, 250
    key = jax.random.PRNGKey(0)
    kx, kp = jax.random.split(key)

    x = jax.random.normal(kx, (B, S, H), jnp.float32)
    raw = init_params(kp, H, V)
    params = prepare_params(raw)          # one-time weight cast + pad

    out = language_head(x, params, vocab_size=V, tm=16, tn=128)
    out = jax.block_until_ready(out)

    ref = _reference(x, raw)
    assert out.shape == (B, S, V)
    assert out.dtype == jnp.bfloat16
    assert jnp.allclose(out.astype(jnp.float32), ref, atol=2e-2, rtol=2e-2), \
        "mismatch vs reference"

    print("KERNEL_OK")
</pallas_src>

<mosaic_0001>
module attributes {stable_mosaic.version = 11 : i64} {
  func.func @_lm_head_kernel(%arg0: i32, %arg1: i32, %arg2: memref<16x128xbf16, #tpu.memory_space<vmem>>, %arg3: memref<128x128xbf16, #tpu.memory_space<vmem>>, %arg4: memref<1x128xf32, #tpu.memory_space<vmem>>, %arg5: memref<1x128xf32, #tpu.memory_space<vmem>>, %arg6: memref<1x128xf32, #tpu.memory_space<vmem>>, %arg7: memref<128x128xbf16, #tpu.memory_space<vmem>>, %arg8: memref<1x128xf32, #tpu.memory_space<vmem>>, %arg9: memref<16x128xbf16, #tpu.memory_space<vmem>>, %arg10: memref<16x128xbf16, #tpu.memory_space<vmem>>) attributes {dimension_semantics = [#tpu.dimension_semantics<parallel>, #tpu.dimension_semantics<arbitrary>], iteration_bounds = array<i64: 2, 2>, scalar_prefetch = 0 : i64, scratch_operands = 1 : i64, tpu.core_type = #tpu.core_type<tc>, window_params = [{transform_indices = @transform_0, window_bounds = array<i64: 16, 128>}, {pipeline_mode = #tpu.pipeline_mode<synchronous>, transform_indices = @transform_1, window_bounds = array<i64: 128, 128>}, {pipeline_mode = #tpu.pipeline_mode<synchronous>, transform_indices = @transform_2, window_bounds = array<i64: 1, 128>}, {pipeline_mode = #tpu.pipeline_mode<synchronous>, transform_indices = @transform_3, window_bounds = array<i64: 1, 128>}, {pipeline_mode = #tpu.pipeline_mode<synchronous>, transform_indices = @transform_4, window_bounds = array<i64: 1, 128>}, {transform_indices = @transform_5, window_bounds = array<i64: 128, 128>}, {transform_indices = @transform_6, window_bounds = array<i64: 1, 128>}, {transform_indices = @transform_7, window_bounds = array<i64: 16, 128>}]} {
    %c0_i32 = arith.constant 0 : i32
    %0 = arith.cmpi eq, %arg1, %c0_i32 : i32
    %1 = arith.extui %0 : i1 to i32
    %c0_i32_0 = arith.constant 0 : i32
    %2 = arith.cmpi ne, %1, %c0_i32_0 : i32
    scf.if %2 {
      %c0_8 = arith.constant 0 : index
      %c0_9 = arith.constant 0 : index
      %11 = vector.load %arg2[%c0_8, %c0_9] : memref<16x128xbf16, #tpu.memory_space<vmem>>, vector<16x128xbf16>
      %c0_10 = arith.constant 0 : index
      %c0_11 = arith.constant 0 : index
      %12 = vector.load %arg3[%c0_10, %c0_11] : memref<128x128xbf16, #tpu.memory_space<vmem>>, vector<128x128xbf16>
      %cst_12 = arith.constant dense<0.000000e+00> : vector<16x128xf32>
      %13 = tpu.matmul %11, %12, %cst_12 {dimension_numbers = #tpu.dot_dimension_numbers<[1], [0], [0], [1], [0, 0, 1, 1], [], []>} : vector<16x128xbf16>, vector<128x128xbf16>, vector<16x128xf32> -> vector<16x128xf32>
      %c0_13 = arith.constant 0 : index
      %c0_14 = arith.constant 0 : index
      %14 = vector.load %arg4[%c0_13, %c0_14] : memref<1x128xf32, #tpu.memory_space<vmem>>, vector<1x128xf32>
      %15 = vector.broadcast %14 : vector<1x128xf32> to vector<16x128xf32>
      %16 = arith.addf %13, %15 : vector<16x128xf32>
      %cst_15 = arith.constant 5.000000e-01 : f32
      %17 = vector.broadcast %cst_15 : f32 to vector<16x128xf32>
      %18 = arith.mulf %16, %17 : vector<16x128xf32>
      %cst_16 = arith.constant 0.707106769 : f32
      %19 = vector.broadcast %cst_16 : f32 to vector<16x128xf32>
      %20 = arith.mulf %16, %19 : vector<16x128xf32>
      %21 = math.erf %20 : vector<16x128xf32>
      %cst_17 = arith.constant 1.000000e+00 : f32
      %22 = vector.broadcast %cst_17 : f32 to vector<16x128xf32>
      %23 = arith.addf %22, %21 : vector<16x128xf32>
      %24 = arith.mulf %18, %23 : vector<16x128xf32>
      %cst_18 = arith.constant dense<0.000000e+00> : vector<16xf32>
      %25 = vector.multi_reduction <add>, %24, %cst_18 [1] : vector<16x128xf32> to vector<16xf32>
      %26 = vector.shape_cast %25 : vector<16xf32> to vector<16x1xf32>
      %cst_19 = arith.constant 1.280000e+02 : f32
      %27 = vector.broadcast %cst_19 : f32 to vector<16x1xf32>
      %28 = arith.divf %26, %27 : vector<16x1xf32>
      %29 = vector.broadcast %28 : vector<16x1xf32> to vector<16x128xf32>
      %30 = arith.subf %24, %29 : vector<16x128xf32>
      %31 = vector.broadcast %28 : vector<16x1xf32> to vector<16x128xf32>
      %32 = arith.subf %24, %31 : vector<16x128xf32>
      %33 = arith.mulf %30, %32 : vector<16x128xf32>
      %cst_20 = arith.constant dense<0.000000e+00> : vector<16xf32>
      %34 = vector.multi_reduction <add>, %33, %cst_20 [1] : vector<16x128xf32> to vector<16xf32>
      %35 = vector.shape_cast %34 : vector<16xf32> to vector<16x1xf32>
      %cst_21 = arith.constant 1.280000e+02 : f32
      %36 = vector.broadcast %cst_21 : f32 to vector<16x1xf32>
      %37 = arith.divf %35, %36 : vector<16x1xf32>
      %38 = vector.broadcast %28 : vector<16x1xf32> to vector<16x128xf32>
      %39 = arith.subf %24, %38 : vector<16x128xf32>
      %cst_22 = arith.constant 9.99999996E-13 : f32
      %40 = vector.broadcast %cst_22 : f32 to vector<16x1xf32>
      %41 = arith.addf %37, %40 : vector<16x1xf32>
      %42 = math.rsqrt %41 : vector<16x1xf32>
      %43 = vector.broadcast %42 : vector<16x1xf32> to vector<16x128xf32>
      %44 = arith.mulf %39, %43 : vector<16x128xf32>
      %c0_23 = arith.constant 0 : index
      %c0_24 = arith.constant 0 : index
      %45 = vector.load %arg5[%c0_23, %c0_24] : memref<1x128xf32, #tpu.memory_space<vmem>>, vector<1x128xf32>
      %46 = vector.broadcast %45 : vector<1x128xf32> to vector<16x128xf32>
      %47 = arith.mulf %44, %46 : vector<16x128xf32>
      %c0_25 = arith.constant 0 : index
      %c0_26 = arith.constant 0 : index
      %48 = vector.load %arg6[%c0_25, %c0_26] : memref<1x128xf32, #tpu.memory_space<vmem>>, vector<1x128xf32>
      %49 = vector.broadcast %48 : vector<1x128xf32> to vector<16x128xf32>
      %50 = arith.addf %47, %49 : vector<16x128xf32>
      %51 = arith.truncf %50 : vector<16x128xf32> to vector<16x128xbf16>
      %c0_27 = arith.constant 0 : index
      %c0_28 = arith.constant 0 : index
      %52 = vector.load %arg10[%c0_27, %c0_28] : memref<16x128xbf16, #tpu.memory_space<vmem>>, vector<16x128xbf16>
      tpu.vector_store %arg10[%c0_27, %c0_28], %51 {strides = array<i32>} : memref<16x128xbf16, #tpu.memory_space<vmem>>, vector<16x128xbf16>,
    } else {
    }
    %c0 = arith.constant 0 : index
    %c0_1 = arith.constant 0 : index
    %3 = vector.load %arg10[%c0, %c0_1] : memref<16x128xbf16, #tpu.memory_space<vmem>>, vector<16x128xbf16>
    %c0_2 = arith.constant 0 : index
    %c0_3 = arith.constant 0 : index
    %4 = vector.load %arg7[%c0_2, %c0_3] : memref<128x128xbf16, #tpu.memory_space<vmem>>, vector<128x128xbf16>
    %cst = arith.constant dense<0.000000e+00> : vector<16x128xf32>
    %5 = tpu.matmul %3, %4, %cst {dimension_numbers = #tpu.dot_dimension_numbers<[1], [0], [0], [1], [0, 0, 1, 1], [], []>} : vector<16x128xbf16>, vector<128x128xbf16>, vector<16x128xf32> -> vector<16x128xf32>
    %c0_4 = arith.constant 0 : index
    %c0_5 = arith.constant 0 : index
    %6 = vector.load %arg8[%c0_4, %c0_5] : memref<1x128xf32, #tpu.memory_space<vmem>>, vector<1x128xf32>
    %7 = vector.broadcast %6 : vector<1x128xf32> to vector<16x128xf32>
    %8 = arith.addf %5, %7 : vector<16x128xf32>
    %9 = arith.truncf %8 : vector<16x128xf32> to vector<16x128xbf16>
    %c0_6 = arith.constant 0 : index
    %c0_7 = arith.constant 0 : index
    %10 = vector.load %arg9[%c0_6, %c0_7] : memref<16x128xbf16, #tpu.memory_space<vmem>>, vector<16x128xbf16>
    tpu.vector_store %arg9[%c0_6, %c0_7], %9 {strides = array<i32>} : memref<16x128xbf16, #tpu.memory_space<vmem>>, vector<16x128xbf16>,
    return
  }
  func.func @transform_0(%arg0: i32, %arg1: i32) -> (i32, i32) {
    %c0_i32 = arith.constant 0 : i32
    %c0_i32_0 = arith.constant 0 : i32
    return %arg0, %c0_i32 : i32, i32
  }
  func.func @transform_1(%arg0: i32, %arg1: i32) -> (i32, i32) {
    %c0_i32 = arith.constant 0 : i32
    %c0_i32_0 = arith.constant 0 : i32
    %c0_i32_1 = arith.constant 0 : i32
    return %c0_i32, %c0_i32_0 : i32, i32
  }
  func.func @transform_2(%arg0: i32, %arg1: i32) -> (i32, i32) {
    %c0_i32 = arith.constant 0 : i32
    %c0_i32_0 = arith.constant 0 : i32
    %c0_i32_1 = arith.constant 0 : i32
    return %c0_i32, %c0_i32_0 : i32, i32
  }
  func.func @transform_3(%arg0: i32, %arg1: i32) -> (i32, i32) {
    %c0_i32 = arith.constant 0 : i32
    %c0_i32_0 = arith.constant 0 : i32
    %c0_i32_1 = arith.constant 0 : i32
    return %c0_i32, %c0_i32_0 : i32, i32
  }
  func.func @transform_4(%arg0: i32, %arg1: i32) -> (i32, i32) {
    %c0_i32 = arith.constant 0 : i32
    %c0_i32_0 = arith.constant 0 : i32
    %c0_i32_1 = arith.constant 0 : i32
    return %c0_i32, %c0_i32_0 : i32, i32
  }
  func.func @transform_5(%arg0: i32, %arg1: i32) -> (i32, i32) {
    %c0_i32 = arith.constant 0 : i32
    %c0_i32_0 = arith.constant 0 : i32
    return %c0_i32, %arg1 : i32, i32
  }
  func.func @transform_6(%arg0: i32, %arg1: i32) -> (i32, i32) {
    %c0_i32 = arith.constant 0 : i32
    %c0_i32_0 = arith.constant 0 : i32
    return %c0_i32, %arg1 : i32, i32
  }
  func.func @transform_7(%arg0: i32, %arg1: i32) -> (i32, i32) {
    %c0_i32 = arith.constant 0 : i32
    return %arg0, %arg1 : i32, i32
  }
}

</mosaic_0001>

<llo_original>
// kernel: tpu_custom_call.1
$region0: #{tpu_custom_call.1}
  #allocation0 [shape = 'u32[]', space=smem, size = 0x4, offset = 0x4, fixed_abs, tag = 'smem constant byte address 0x4 - core index']
  #allocation1 [shape = 'u32[144,128]{1,0:T(1,128)}', space=vmem, size = 0x12000, scoped, tag = 'internal scratch']
  #allocation2 [shape = 'bf16[16,128]{1,0:T(16,128)(2,1)}', space=vmem, size = 0x1000, scoped, tag = 'scratch operand']
  %s0 = inlined_call_operand.hbm [shape: bf16[32,128], index: 0, kind: input, shape index: {}]
  %s1 = inlined_call_operand.hbm [shape: bf16[128,128], index: 1, kind: input, shape index: {}]
  %s2 = inlined_call_operand.vmem [shape: f32[1,128], index: 2, kind: input, shape index: {}]
  %s3 = inlined_call_operand.vmem [shape: f32[1,128], index: 3, kind: input, shape index: {}]
  %s4 = inlined_call_operand.vmem [shape: f32[1,128], index: 4, kind: input, shape index: {}]
  %s5 = inlined_call_operand.hbm [shape: bf16[128,256], index: 5, kind: input, shape index: {}]
  %s6 = inlined_call_operand.vmem [shape: f32[1,256], index: 6, kind: input, shape index: {}]
  %s7 = inlined_call_operand.hbm [shape: bf16[32,250], index: 7, kind: output, shape index: {}]
  %s8 = sld [smem:[#allocation0]]
  $region77: #{tpu_custom_call.1} parent=0
    _
  %s10 = ssub.s32 1, %s8
  %s11 = scalar_select 0, %s10, %s8
  $region1: #{tpu_custom_call.1} parent=0
    #allocation3 [shape = 'u8[8192]{0}', space=vmem, size = 0x2000, scoped, tag = 'input window, operand 0']
    #allocation4 [shape = 's32[2]{0}', space=sflag, size = 0x8, scoped, tag = 'scoped memory for tpu_custom_call.1']
    #allocation5 [shape = 's32[2]{0}', space=sflag, size = 0x8, scoped, tag = 'scoped memory for tpu_custom_call.1']
    #allocation6 [shape = 'u8[32768]{0}', space=vmem, size = 0x8000, scoped, tag = 'input window, operand 1, single buffered']
    #allocation7 [shape = 's32[1]{0}', space=sflag, size = 0x4, scoped, tag = 'scoped memory for tpu_custom_call.1']
    #allocation8 [shape = 'u8[65536]{0}', space=vmem, size = 0x10000, scoped, tag = 'input window, operand 5']
    #allocation9 [shape = 'u8[8192]{0}', space=vmem, size = 0x2000, scoped, tag = 'output window, operand 0']
    %12 = vsyncpa [#allocation4], 0
    %s13 = scalar_lea.sflag [#allocation4], 1
    %14 = vsyncpa %s13, 0
    %15 = vsyncpa [#allocation7], 0
    %16 = vsyncpa [#allocation5], 0
    %s17 = scalar_lea.sflag [#allocation5], 1
    %18 = vsyncpa %s17, 0
    loop: start=0, step=1, limit=6
    $region2: #{tpu_custom_call.1} parent=1 // loop_pre_header
      _
    $region3: #{tpu_custom_call.1} parent=1 // loop_header
      %s20 = sphi 0, %s24
      %p21 = scmp.ge.s32.totalorder %s20, 6
      %s27 = sphi 0, %s39
      %s28 = sphi 0, %s35
      %s29 = sphi 0, %s27
      %s30 = sphi 0, %s28
      %s31 = sphi 0, %s29
      %s32 = sphi 0, %s30
      %s42 = sphi 0, %s44
      %s45 = sphi 0, %s42
      %s46 = sphi 0, %s45
      %s62 = sphi 0, %s46
      %s66 = sphi 0, %s66
      %s68 = sphi 0, %s66
      %s69 = sphi 0, %s68
      %s83 = sphi 0, %s69
      %s87 = sphi 0, %s87
      %s89 = sphi 0, %s87
      %s90 = sphi 0, %s89
      %s104 = sphi 0, %s90
      %s108 = sphi 0, %s108
      %s110 = sphi 0, %s108
      %s111 = sphi 0, %s110
      %s125 = sphi 0, %s111
      %s129 = sphi 0, %s129
      %s131 = sphi 0, %s129
      %s132 = sphi 0, %s131
      %s146 = sphi 0, %s132
      %s152 = sphi 0, %s154
      %s155 = sphi 0, %s152
      %s156 = sphi 0, %s155
      %s172 = sphi 0, %s156
      %s178 = sphi 0, %s180
      %s181 = sphi 0, %s178
      %s182 = sphi 0, %s181
      %s198 = sphi 0, %s182
      %s206 = sphi 0, %s208
      %s209 = sphi 0, %s206
      %s210 = sphi 0, %s209
      %s226 = sphi 0, %s210
    $region4: #{tpu_custom_call.1} parent=1 // loop_header_branch
      %23 = sbr.rel (%p21) target = $region8
    $region5: #{tpu_custom_call.1} parent=1 // loop_body
      %s25 = ssub.s32 %s20, 1
      %s26 = ssub.s32 %s20, 2
      %s33 = sadd.s32 1, %s28
      %p34 = scmp.ge.s32.totalorder %s33, 2
      %s35 = scalar_select %p34, 0, %s33
      %s36 = sadd.s32 1, %s27
      %s37 = scalar_select %p34, %s36, %s27
      %p38 = scmp.ge.s32.totalorder %s37, 2
      %s39 = scalar_select %p38, 0, %s37
      %s40 = ssub.s32 %s27, %s39
      %p41 = scmp.eq.s32.totalorder %s40, 0
      %s43 = sadd.s32 %s42, 1
      %s44 = scalar_select %p41, %s42, %s43
      %p47 = pneg %p41
      %p48 = scmp.eq.s32.totalorder %s20, 3
      %p49 = por %p47, %p48
      %p50 = scmp.ne.s32.totalorder %s42, %s45
      %p51 = scmp.eq.s32.totalorder %s20, 0
      %p52 = por %p50, %p51
      %p53 = scmp.ne.s32.totalorder %s42, %s45
      %p54 = scmp.eq.s32.totalorder %s25, 3
      %p55 = por %p53, %p54
      %p56 = scmp.ne.s32.totalorder %s45, %s46
      %p57 = scmp.eq.s32.totalorder %s25, 0
      %p58 = por %p56, %p57
      %p59 = scmp.ne.s32.totalorder %s45, %s46
      %p60 = scmp.eq.s32.totalorder %s26, 3
      %p61 = por %p59, %p60
      %p63 = scmp.ne.s32.totalorder %s46, %s62
      %p64 = scmp.eq.s32.totalorder %s26, 0
      %p65 = por %p63, %p64
      %s67 = sadd.s32 %s66, 1
      %p70 = scmp.eq.s32.totalorder %s20, 3
      %p71 = scmp.ne.s32.totalorder %s66, %s68
      %p72 = scmp.eq.s32.totalorder %s20, 0
      %p73 = por %p71, %p72
      %p74 = scmp.ne.s32.totalorder %s66, %s68
      %p75 = scmp.eq.s32.totalorder %s25, 3
      %p76 = por %p74, %p75
      %p77 = scmp.ne.s32.totalorder %s68, %s69
      %p78 = scmp.eq.s32.totalorder %s25, 0
      %p79 = por %p77, %p78
      %p80 = scmp.ne.s32.totalorder %s68, %s69
      %p81 = scmp.eq.s32.totalorder %s26, 3
      %p82 = por %p80, %p81
      %p84 = scmp.ne.s32.totalorder %s69, %s83
      %p85 = scmp.eq.s32.totalorder %s26, 0
      %p86 = por %p84, %p85
      %s88 = sadd.s32 %s87, 1
      %p91 = scmp.eq.s32.totalorder %s20, 3
      %p92 = scmp.ne.s32.totalorder %s87, %s89
      %p93 = scmp.eq.s32.totalorder %s20, 0
      %p94 = por %p92, %p93
      %p95 = scmp.ne.s32.totalorder %s87, %s89
      %p96 = scmp.eq.s32.totalorder %s25, 3
      %p97 = por %p95, %p96
      %p98 = scmp.ne.s32.totalorder %s89, %s90
      %p99 = scmp.eq.s32.totalorder %s25, 0
      %p100 = por %p98, %p99
      %p101 = scmp.ne.s32.totalorder %s89, %s90
      %p102 = scmp.eq.s32.totalorder %s26, 3
      %p103 = por %p101, %p102
      %p105 = scmp.ne.s32.totalorder %s90, %s104
      %p106 = scmp.eq.s32.totalorder %s26, 0
      %p107 = por %p105, %p106
      %s109 = sadd.s32 %s108, 1
      %p112 = scmp.eq.s32.totalorder %s20, 3
      %p113 = scmp.ne.s32.totalorder %s108, %s110
      %p114 = scmp.eq.s32.totalorder %s20, 0
      %p115 = por %p113, %p114
      %p116 = scmp.ne.s32.totalorder %s108, %s110
      %p117 = scmp.eq.s32.totalorder %s25, 3
      %p118 = por %p116, %p117
      %p119 = scmp.ne.s32.totalorder %s110, %s111
      %p120 = scmp.eq.s32.totalorder %s25, 0
      %p121 = por %p119, %p120
      %p122 = scmp.ne.s32.totalorder %s110, %s111
      %p123 = scmp.eq.s32.totalorder %s26, 3
      %p124 = por %p122, %p123
      %p126 = scmp.ne.s32.totalorder %s111, %s125
      %p127 = scmp.eq.s32.totalorder %s26, 0
      %p128 = por %p126, %p127
      %s130 = sadd.s32 %s129, 1
      %p133 = scmp.eq.s32.totalorder %s20, 3
      %p134 = scmp.ne.s32.totalorder %s129, %s131
      %p135 = scmp.eq.s32.totalorder %s20, 0
      %p136 = por %p134, %p135
      %p137 = scmp.ne.s32.totalorder %s129, %s131
      %p138 = scmp.eq.s32.totalorder %s25, 3
      %p139 = por %p137, %p138
      %p140 = scmp.ne.s32.totalorder %s131, %s132
      %p141 = scmp.eq.s32.totalorder %s25, 0
      %p142 = por %p140, %p141
      %p143 = scmp.ne.s32.totalorder %s131, %s132
      %p144 = scmp.eq.s32.totalorder %s26, 3
      %p145 = por %p143, %p144
      %p147 = scmp.ne.s32.totalorder %s132, %s146
      %p148 = scmp.eq.s32.totalorder %s26, 0
      %p149 = por %p147, %p148
      %s150 = ssub.s32 %s28, %s35
      %p151 = scmp.eq.s32.totalorder %s150, 0
      %s153 = sadd.s32 %s152, 1
      %s154 = scalar_select %p151, %s152, %s153
      %p157 = pneg %p151
      %p158 = scmp.eq.s32.totalorder %s20, 3
      %p159 = por %p157, %p158
      %p160 = scmp.ne.s32.totalorder %s152, %s155
      %p161 = scmp.eq.s32.totalorder %s20, 0
      %p162 = por %p160, %p161
      %p163 = scmp.ne.s32.totalorder %s152, %s155
      %p164 = scmp.eq.s32.totalorder %s25, 3
      %p165 = por %p163, %p164
      %p166 = scmp.ne.s32.totalorder %s155, %s156
      %p167 = scmp.eq.s32.totalorder %s25, 0
      %p168 = por %p166, %p167
      %p169 = scmp.ne.s32.totalorder %s155, %s156
      %p170 = scmp.eq.s32.totalorder %s26, 3
      %p171 = por %p169, %p170
      %p173 = scmp.ne.s32.totalorder %s156, %s172
      %p174 = scmp.eq.s32.totalorder %s26, 0
      %p175 = por %p173, %p174
      %s176 = ssub.s32 %s28, %s35
      %p177 = scmp.eq.s32.totalorder %s176, 0
      %s179 = sadd.s32 %s178, 1
      %s180 = scalar_select %p177, %s178, %s179
      %p183 = pneg %p177
      %p184 = scmp.eq.s32.totalorder %s20, 3
      %p185 = por %p183, %p184
      %p186 = scmp.ne.s32.totalorder %s178, %s181
      %p187 = scmp.eq.s32.totalorder %s20, 0
      %p188 = por %p186, %p187
      %p189 = scmp.ne.s32.totalorder %s178, %s181
      %p190 = scmp.eq.s32.totalorder %s25, 3
      %p191 = por %p189, %p190
      %p192 = scmp.ne.s32.totalorder %s181, %s182
      %p193 = scmp.eq.s32.totalorder %s25, 0
      %p194 = por %p192, %p193
      %p195 = scmp.ne.s32.totalorder %s181, %s182
      %p196 = scmp.eq.s32.totalorder %s26, 3
      %p197 = por %p195, %p196
      %p199 = scmp.ne.s32.totalorder %s182, %s198
      %p200 = scmp.eq.s32.totalorder %s26, 0
      %p201 = por %p199, %p200
      %s202 = ssub.s32 %s27, %s39
      %s203 = ssub.s32 %s28, %s35
      %s204 = sor.u32 %s202, %s203
      %p205 = scmp.eq.s32.totalorder %s204, 0
      %s207 = sadd.s32 %s206, 1
      %s208 = scalar_select %p205, %s206, %s207
      %p211 = pneg %p205
      %p212 = scmp.eq.s32.totalorder %s20, 3
      %p213 = por %p211, %p212
      %p214 = scmp.ne.s32.totalorder %s206, %s209
      %p215 = scmp.eq.s32.totalorder %s20, 0
      %p216 = por %p214, %p215
      %p217 = scmp.ne.s32.totalorder %s206, %s209
      %p218 = scmp.eq.s32.totalorder %s25, 3
      %p219 = por %p217, %p218
      %p220 = scmp.ne.s32.totalorder %s209, %s210
      %p221 = scmp.eq.s32.totalorder %s25, 0
      %p222 = por %p220, %p221
      %p223 = scmp.ne.s32.totalorder %s209, %s210
      %p224 = scmp.eq.s32.totalorder %s26, 3
      %p225 = por %p223, %p224
      %p227 = scmp.ne.s32.totalorder %s210, %s226
      %p228 = scmp.eq.s32.totalorder %s26, 0
      %p229 = por %p227, %p228
      %p230 = scmp.le.s32.totalorder 1, %s20
      %p231 = scmp.lt.s32.totalorder %s20, 5
      %p232 = pnand %p230, %p231
      %p233 = pneg %p232
      // Predicated region
      $region9: #{tpu_custom_call.1} parent=5 // pred_check
        _
      $region10: #{tpu_custom_call.1} parent=5 // pred_check_branch
        %235 = sbr.rel (%p232) target = $region12
      $region11: #{tpu_custom_call.1} parent=5 // pred_region
        %s236 = ssub.s32 %s20, 1
        // Predicated region
        $region13: #{tpu_custom_call.1} parent=11 // pred_check
          %p237 = pneg %p79
        $region14: #{tpu_custom_call.1} parent=11 // pred_check_branch
          %239 = sbr.rel (%p237) target = $region16
        $region15: #{tpu_custom_call.1} parent=11 // pred_region
          %s241 = ssub.s32 1024, 1024
          %242 = vsyncadd [#allocation7], %s241
          %s243 = sshll.u32 [#allocation6], 4
          %s244 = int_to_ptr.vmem [resolvable:$true] %s243
          %249 = dma.hbm_to_vmem [thread:$0]  %s1, 1024, %s244, [#allocation7], 64, 64, 4
        $region16: #{tpu_custom_call.1} parent=11 // pred_fallthru
          _
        // Predicated region
        $region17: #{tpu_custom_call.1} parent=11 // pred_check
          %p250 = pneg %p100
        $region18: #{tpu_custom_call.1} parent=11 // pred_check_branch
          %252 = sbr.rel (%p250) target = $region20
        $region19: #{tpu_custom_call.1} parent=11 // pred_region
          _
        $region20: #{tpu_custom_call.1} parent=11 // pred_fallthru
          _
        // Predicated region
        $region21: #{tpu_custom_call.1} parent=11 // pred_check
          %p253 = pneg %p121
        $region22: #{tpu_custom_call.1} parent=11 // pred_check_branch
          %255 = sbr.rel (%p253) target = $region24
        $region23: #{tpu_custom_call.1} parent=11 // pred_region
          _
        $region24: #{tpu_custom_call.1} parent=11 // pred_fallthru
          _
        // Predicated region
        $region25: #{tpu_custom_call.1} parent=11 // pred_check
          %p256 = pneg %p142
        $region26: #{tpu_custom_call.1} parent=11 // pred_check_branch
          %258 = sbr.rel (%p256) target = $region28
        $region27: #{tpu_custom_call.1} parent=11 // pred_region
          _
        $region28: #{tpu_custom_call.1} parent=11 // pred_fallthru
          _
      $region12: #{tpu_custom_call.1} parent=5 // pred_fallthru
        _
      %p259 = scmp.lt.s32.totalorder %s20, 4
      // Predicated region
      $region29: #{tpu_custom_call.1} parent=5 // pred_check
        %p260 = pneg %p259
      $region30: #{tpu_custom_call.1} parent=5 // pred_check_branch
        %262 = sbr.rel (%p260) target = $region32
      $region31: #{tpu_custom_call.1} parent=5 // pred_region
        // Predicated region
        $region33: #{tpu_custom_call.1} parent=31 // pred_check
          %p263 = pneg %p52
        $region34: #{tpu_custom_call.1} parent=31 // pred_check_branch
          %265 = sbr.rel (%p263) target = $region36
        $region35: #{tpu_custom_call.1} parent=31 // pred_region
          %s266 = sand.u32 %s20, 1
          %s267 = scalar_lea.sflag [#allocation4], %s266
          %s268 = sand.u32 %s42, 1
          %s269 = smul.addr %s268, 8
          %s270 = scalar_lea.vmem [#allocation3], %s269
          %s271 = smul.u32 2, %s27
          %s273 = ssub.s32 128, 128
          %274 = vsyncadd %s267, %s273
          %s275 = smul.addr %s271, 64
          %s276 = scalar_lea.hbm %s0, %s275
          %s277 = sshll.u32 %s270, 4
          %s278 = int_to_ptr.vmem [resolvable:$true] %s277
          %283 = dma.hbm_to_vmem [thread:$0]  %s276, 128, %s278, %s267, 64, 64, 4
        $region36: #{tpu_custom_call.1} parent=31 // pred_fallthru
          _
        // Predicated region
        $region37: #{tpu_custom_call.1} parent=31 // pred_check
          %p284 = pneg %p162
        $region38: #{tpu_custom_call.1} parent=31 // pred_check_branch
          %286 = sbr.rel (%p284) target = $region40
        $region39: #{tpu_custom_call.1} parent=31 // pred_region
          %s287 = sand.u32 %s20, 1
          %s288 = scalar_lea.sflag [#allocation4], %s287
          %s289 = sand.u32 %s152, 1
          %s290 = smul.addr %s289, 64
          %s291 = scalar_lea.vmem [#allocation8], %s290
          %s293 = ssub.s32 1024, 1024
          %294 = vsyncadd %s288, %s293
          %s295 = smul.addr %s28, 64
          %s296 = scalar_lea.hbm %s5, %s295
          %s297 = sshll.u32 %s291, 4
          %s298 = int_to_ptr.vmem [resolvable:$true] %s297
          %303 = dma.hbm_to_vmem [thread:$0]  %s296, 1024, %s298, %s288, 128, 64, 4
        $region40: #{tpu_custom_call.1} parent=31 // pred_fallthru
          _
        // Predicated region
        $region41: #{tpu_custom_call.1} parent=31 // pred_check
          %p304 = pneg %p188
        $region42: #{tpu_custom_call.1} parent=31 // pred_check_branch
          %306 = sbr.rel (%p304) target = $region44
        $region43: #{tpu_custom_call.1} parent=31 // pred_region
          %p307 = scmp.lt.s32.totalorder %s28, 1
          %s308 = scalar_select %p307, %s28, 1
          %s309 = scalar_lea.vmem %s6, %s308
        $region44: #{tpu_custom_call.1} parent=31 // pred_fallthru
          _
      $region32: #{tpu_custom_call.1} parent=5 // pred_fallthru
        _
      %p310 = scmp.le.s32.totalorder 1, %s20
      %p311 = scmp.lt.s32.totalorder %s20, 5
      %p312 = pnand %p310, %p311
      %p313 = pneg %p312
      // Predicated region
      $region45: #{tpu_custom_call.1} parent=5 // pred_check
        _
      $region46: #{tpu_custom_call.1} parent=5 // pred_check_branch
        %315 = sbr.rel (%p312) target = $region48
      $region47: #{tpu_custom_call.1} parent=5 // pred_region
        %s316 = ssub.s32 %s20, 1
        %s317 = sand.u32 %s25, 1
        %s318 = scalar_lea.sflag [#allocation4], %s317
        %s319 = sand.u32 %s45, 1
        %s320 = smul.addr %s319, 8
        %s321 = scalar_lea.vmem [#allocation3], %s320
        // Predicated region
        $region49: #{tpu_custom_call.1} parent=47 // pred_check
          %p322 = pneg %p58
        $region50: #{tpu_custom_call.1} parent=47 // pred_check_branch
          %324 = sbr.rel (%p322) target = $region52
        $region51: #{tpu_custom_call.1} parent=47 // pred_region
          %325 = dma.done %s318, 128
        $region52: #{tpu_custom_call.1} parent=47 // pred_fallthru
          _
        // Predicated region
        $region53: #{tpu_custom_call.1} parent=47 // pred_check
          %p326 = pneg %p79
        $region54: #{tpu_custom_call.1} parent=47 // pred_check_branch
          %328 = sbr.rel (%p326) target = $region56
        $region55: #{tpu_custom_call.1} parent=47 // pred_region
          %329 = dma.done [#allocation7], 1024
        $region56: #{tpu_custom_call.1} parent=47 // pred_fallthru
          _
        %s330 = sand.u32 %s25, 1
        %s331 = scalar_lea.sflag [#allocation4], %s330
        %s332 = sand.u32 %s155, 1
        %s333 = smul.addr %s332, 64
        %s334 = scalar_lea.vmem [#allocation8], %s333
        // Predicated region
        $region57: #{tpu_custom_call.1} parent=47 // pred_check
          %p335 = pneg %p168
        $region58: #{tpu_custom_call.1} parent=47 // pred_check_branch
          %337 = sbr.rel (%p335) target = $region60
        $region59: #{tpu_custom_call.1} parent=47 // pred_region
          %338 = dma.done %s331, 1024
        $region60: #{tpu_custom_call.1} parent=47 // pred_fallthru
          _
        %s339 = sand.u32 %s25, 1
        %s340 = scalar_lea.sflag [#allocation4], %s339
        %s341 = sand.u32 %s45, 1
        %s342 = smul.addr %s341, 8
        %s343 = scalar_lea.vmem [#allocation3], %s342
        %p344 = pneg %p58
        %p345 = pneg %p55
        %p346 = pneg %p79
        %p347 = pneg %p76
        %p348 = pneg %p100
        %p349 = pneg %p97
        %p350 = pneg %p121
        %p351 = pneg %p118
        %p352 = pneg %p142
        %p353 = pneg %p139
        %s354 = sand.u32 %s25, 1
        %s355 = scalar_lea.sflag [#allocation4], %s354
        %s356 = sand.u32 %s155, 1
        %s357 = smul.addr %s356, 64
        %s358 = scalar_lea.vmem [#allocation8], %s357
        %p359 = pneg %p168
        %p360 = pneg %p165
        %p361 = scmp.lt.s32.totalorder %s30, 1
        %s362 = scalar_select %p361, %s30, 1
        %s363 = scalar_lea.vmem %s6, %s362
        %p364 = pneg %p194
        %p365 = pneg %p191
        %p366 = pneg %p222
        %p367 = pneg %p219
        %s368 = sand.u32 %s209, 1
        %s369 = scalar_lea.sflag [#allocation5], %s368
        %s370 = sand.u32 %s209, 1
        %s371 = smul.addr %s370, 8
        %s372 = scalar_lea.vmem [#allocation9], %s371
        %s373 = smul.u32 2, %s29
        %p374 = scmp.lt.s32.totalorder %s30, 1
        %s375 = scalar_select %p374, %s30, 1
        %s376 = scalar_lea.vmem %s6, %s375
        %s377 = smul.u32 2, %s29
        %p379 = scmp.eq.s32.totalorder %s30, 0
        // Predicated region
        $region61: #{tpu_custom_call.1} parent=47 // pred_check
          %p380 = pneg %p379
        $region62: #{tpu_custom_call.1} parent=47 // pred_check_branch
          %382 = sbr.rel (%p380) target = $region64
        $region63: #{tpu_custom_call.1} parent=47 // pred_region
          %v383 = vld [vmem:[%s321] sm:$0xf]
          %v384 = vld [vmem:[%s321 + $0x4] sm:$0xf]
          %v385 = vld [vmem:[#allocation6] sm:$0xf]
          %v386 = vld [vmem:[#allocation6 + $0x4] sm:$0xf]
          %v387 = vld [vmem:[#allocation6 + $0x8] sm:$0xf]
          %v388 = vld [vmem:[#allocation6 + $0xc] sm:$0xf]
          %v389 = vld [vmem:[#allocation6 + $0x10] sm:$0xf]
          %v390 = vld [vmem:[#allocation6 + $0x14] sm:$0xf]
          %v391 = vld [vmem:[#allocation6 + $0x18] sm:$0xf]
          %v392 = vld [vmem:[#allocation6 + $0x1c] sm:$0xf]
          %v393 = vld [vmem:[#allocation6 + $0x20] sm:$0xf]
          %v394 = vld [vmem:[#allocation6 + $0x24] sm:$0xf]
          %v395 = vld [vmem:[#allocation6 + $0x28] sm:$0xf]
          %v396 = vld [vmem:[#allocation6 + $0x2c] sm:$0xf]
          %v397 = vld [vmem:[#allocation6 + $0x30] sm:$0xf]
          %v398 = vld [vmem:[#allocation6 + $0x34] sm:$0xf]
          %v399 = vld [vmem:[#allocation6 + $0x38] sm:$0xf]
          %v400 = vld [vmem:[#allocation6 + $0x3c] sm:$0xf]
          %v401 = vld [vmem:[%s2] sm:$0x1]
          %v403 = vlaneseq
          %v404 = vshrl.u32 %v403, 7
          %v405 = vsub.s32 0, %v404
          %v406 = vrot.slane %v401, %v405
          %v410 = vunpack.c.l.b16 %v383
          %v411 = vunpack.c.l.b16 %v384
          %v412 = vpack.c.b16 %v411, %v410
          %v430 = vunpack.c.l.b16 %v385
          %v431 = vunpack.c.l.b16 %v386
          %v432 = vunpack.c.l.b16 %v387
          %v433 = vunpack.c.l.b16 %v388
          %v434 = vunpack.c.l.b16 %v389
          %v435 = vunpack.c.l.b16 %v390
          %v436 = vunpack.c.l.b16 %v391
          %v437 = vunpack.c.l.b16 %v392
          %v438 = vunpack.c.l.b16 %v393
          %v439 = vunpack.c.l.b16 %v394
          %v440 = vunpack.c.l.b16 %v395
          %v441 = vunpack.c.l.b16 %v396
          %v442 = vunpack.c.l.b16 %v397
          %v443 = vunpack.c.l.b16 %v398
          %v444 = vunpack.c.l.b16 %v399
          %v445 = vunpack.c.l.b16 %v400
          %v446 = vpack.c.b16 %v431, %v430
          %v447 = vpack.c.b16 %v433, %v432
          %v448 = vpack.c.b16 %v435, %v434
          %v449 = vpack.c.b16 %v437, %v436
          %v450 = vpack.c.b16 %v439, %v438
          %v451 = vpack.c.b16 %v441, %v440
          %v452 = vpack.c.b16 %v443, %v442
          %v453 = vpack.c.b16 %v445, %v444
          %462 = vmatprep.subr.bf16.mxu0 0
          %463 = vmatpush1.bf16.msra.mxu0 %v446
          %464 = vmatprep.subr.bf16.mxu0 0
          %465 = vmatpush1.bf16.msra.mxu0 %v447
          %466 = vmatprep.subr.bf16.mxu0 0
          %467 = vmatpush1.bf16.msra.mxu0 %v448
          %468 = vmatprep.subr.bf16.mxu0 0
          %469 = vmatpush1.bf16.msra.mxu0 %v449
          %470 = vmatprep.subr.bf16.mxu0 0
          %471 = vmatpush1.bf16.msra.mxu0 %v450
          %472 = vmatprep.subr.bf16.mxu0 0
          %473 = vmatpush1.bf16.msra.mxu0 %v451
          %474 = vmatprep.subr.bf16.mxu0 0
          %475 = vmatpush1.bf16.msra.mxu0 %v452
          %476 = vmatprep.subr.bf16.mxu0 0
          %477 = vmatpush1.bf16.msra.mxu0 %v453
          %478 = vmatprep.subr.bf16.mxu0 0
          %479 = vmatpush1.bf16.msra.mxu0 0
          %480 = vmatprep.subr.bf16.mxu0 0
          %481 = vmatpush1.bf16.msra.mxu0 0
          %482 = vmatprep.subr.bf16.mxu0 0
          %483 = vmatpush1.bf16.msra.mxu0 0
          %484 = vmatprep.subr.bf16.mxu0 0
          %485 = vmatpush1.bf16.msra.mxu0 0
          %486 = vmatprep.subr.bf16.mxu0 0
          %487 = vmatpush1.bf16.msra.mxu0 0
          %488 = vmatprep.subr.bf16.mxu0 0
          %489 = vmatpush1.bf16.msra.mxu0 0
          %490 = vmatprep.subr.bf16.mxu0 0
          %491 = vmatpush1.bf16.msra.mxu0 0
          %492 = vmatprep.subr.bf16.mxu0 0
          %493 = vmatpush1.bf16.msra.mxu0 0
          %494 = vmatprep.mubr.bf16.mxu0 0
          %495 = vmatmul.mubr.bf16.gmra.mrb[0].mxu0 %v412
          %v496 = vpop.f32.mrb[0].mxu0
          %v497 = vadd.f32 %v406, %v496
          %v498 = vpop.f32.mrb[0].mxu0
          %v499 = vpop.f32.mrb[0].mxu0
          %v500 = vadd.f32 %v406, %v499
          %v501 = vpop.f32.mrb[0].mxu0
          %502 = vdwg.mxu0
          %v503 = vmul.f32 %v497, 0.5
          %v504 = vmul.f32 %v500, 0.5
          %v505 = vmul.f32 %v497, 0.70710677
          %v506 = vmul.f32 %v500, 0.70710677
          %v507 = verf.f32.pop %v505
          %v508 = verf.f32.pop %v506
          %v509 = vadd.f32 %v507, 1.0
          %v510 = vadd.f32 %v508, 1.0
          %v511 = vmul.f32 %v503, %v509
          %v512 = vmul.f32 %v504, %v510
          %513 = vadd.xlane.f32.xlu0 %v511
          %v514 = vpop.xlane.xlu0 %513
          %515 = vadd.xlane.f32.xlu0 %v512
          %v516 = vpop.xlane.xlu0 %515
          %v517 = vrcp.pop 128.0
          %v518 = vmul.f32 %v514, %v517
          %v519 = vmul.f32 %v516, %v517
          %v520 = vsub.f32 %v511, %v518
          %v521 = vsub.f32 %v512, %v519
          %v522 = vmul.f32 %v520, %v520
          %v523 = vmul.f32 %v521, %v521
          %524 = vadd.xlane.f32.xlu0 %v522
          %v525 = vpop.xlane.xlu0 %524
          %526 = vadd.xlane.f32.xlu0 %v523
          %v527 = vpop.xlane.xlu0 %526
          %v528 = vmul.f32 %v525, %v517
          %v529 = vmul.f32 %v527, %v517
          %v530 = vadd.f32 %v528, 1e-12
          %v531 = vadd.f32 %v529, 1e-12
          %v532 = vrsqrt.pop %v530
          %v533 = vrsqrt.pop %v531
          %v534 = vmul.f32 %v520, %v532
          %v535 = vmul.f32 %v521, %v533
          %v536 = vld [vmem:[%s3] sm:$0x1]
          %v538 = vlaneseq
          %v539 = vshrl.u32 %v538, 7
          %v540 = vsub.s32 0, %v539
          %v541 = vrot.slane %v536, %v540
          %v543 = vmul.f32 %v534, %v541
          %v544 = vmul.f32 %v535, %v541
          %v545 = vld [vmem:[%s4] sm:$0x1]
          %v547 = vlaneseq
          %v548 = vshrl.u32 %v547, 7
          %v549 = vsub.s32 0, %v548
          %v550 = vrot.slane %v545, %v549
          %v552 = vadd.f32 %v543, %v550
          %v553 = vadd.f32 %v544, %v550
          %v554 = vpack.c.bf16 %v553, %v552
          %555 = vst [vmem:[#allocation2] sm:$0xff] %v554
        $region64: #{tpu_custom_call.1} parent=47 // pred_fallthru
          _
        %v556 = vld [vmem:[#allocation2] sm:$0xff]
        %v557 = vld [vmem:[%s334] sm:$0xf]
        %v558 = vld [vmem:[%s334 + $0x4] sm:$0xf]
        %v559 = vld [vmem:[%s334 + $0x8] sm:$0xf]
        %v560 = vld [vmem:[%s334 + $0xc] sm:$0xf]
        %v561 = vld [vmem:[%s334 + $0x10] sm:$0xf]
        %v562 = vld [vmem:[%s334 + $0x14] sm:$0xf]
        %v563 = vld [vmem:[%s334 + $0x18] sm:$0xf]
        %v564 = vld [vmem:[%s334 + $0x1c] sm:$0xf]
        %v565 = vld [vmem:[%s334 + $0x20] sm:$0xf]
        %v566 = vld [vmem:[%s334 + $0x24] sm:$0xf]
        %v567 = vld [vmem:[%s334 + $0x28] sm:$0xf]
        %v568 = vld [vmem:[%s334 + $0x2c] sm:$0xf]
        %v569 = vld [vmem:[%s334 + $0x30] sm:$0xf]
        %v570 = vld [vmem:[%s334 + $0x34] sm:$0xf]
        %v571 = vld [vmem:[%s334 + $0x38] sm:$0xf]
        %v572 = vld [vmem:[%s334 + $0x3c] sm:$0xf]
        %v573 = vld [vmem:[%s376] sm:$0x1]
        %v575 = vlaneseq
        %v576 = vshrl.u32 %v575, 7
        %v577 = vsub.s32 0, %v576
        %v578 = vrot.slane %v573, %v577
        %v596 = vunpack.c.l.b16 %v557
        %v597 = vunpack.c.l.b16 %v558
        %v598 = vunpack.c.l.b16 %v559
        %v599 = vunpack.c.l.b16 %v560
        %v600 = vunpack.c.l.b16 %v561
        %v601 = vunpack.c.l.b16 %v562
        %v602 = vunpack.c.l.b16 %v563
        %v603 = vunpack.c.l.b16 %v564
        %v604 = vunpack.c.l.b16 %v565
        %v605 = vunpack.c.l.b16 %v566
        %v606 = vunpack.c.l.b16 %v567
        %v607 = vunpack.c.l.b16 %v568
        %v608 = vunpack.c.l.b16 %v569
        %v609 = vunpack.c.l.b16 %v570
        %v610 = vunpack.c.l.b16 %v571
        %v611 = vunpack.c.l.b16 %v572
        %v612 = vpack.c.b16 %v597, %v596
        %v613 = vpack.c.b16 %v599, %v598
        %v614 = vpack.c.b16 %v601, %v600
        %v615 = vpack.c.b16 %v603, %v602
        %v616 = vpack.c.b16 %v605, %v604
        %v617 = vpack.c.b16 %v607, %v606
        %v618 = vpack.c.b16 %v609, %v608
        %v619 = vpack.c.b16 %v611, %v610
        %628 = vmatprep.subr.bf16.mxu0 0
        %629 = vmatpush1.bf16.msra.mxu0 %v612
        %630 = vmatprep.subr.bf16.mxu0 0
        %631 = vmatpush1.bf16.msra.mxu0 %v613
        %632 = vmatprep.subr.bf16.mxu0 0
        %633 = vmatpush1.bf16.msra.mxu0 %v614
        %634 = vmatprep.subr.bf16.mxu0 0
        %635 = vmatpush1.bf16.msra.mxu0 %v615
        %636 = vmatprep.subr.bf16.mxu0 0
        %637 = vmatpush1.bf16.msra.mxu0 %v616
        %638 = vmatprep.subr.bf16.mxu0 0
        %639 = vmatpush1.bf16.msra.mxu0 %v617
        %640 = vmatprep.subr.bf16.mxu0 0
        %641 = vmatpush1.bf16.msra.mxu0 %v618
        %642 = vmatprep.subr.bf16.mxu0 0
        %643 = vmatpush1.bf16.msra.mxu0 %v619
        %644 = vmatprep.subr.bf16.mxu0 0
        %645 = vmatpush1.bf16.msra.mxu0 0
        %646 = vmatprep.subr.bf16.mxu0 0
        %647 = vmatpush1.bf16.msra.mxu0 0
        %648 = vmatprep.subr.bf16.mxu0 0
        %649 = vmatpush1.bf16.msra.mxu0 0
        %650 = vmatprep.subr.bf16.mxu0 0
        %651 = vmatpush1.bf16.msra.mxu0 0
        %652 = vmatprep.subr.bf16.mxu0 0
        %653 = vmatpush1.bf16.msra.mxu0 0
        %654 = vmatprep.subr.bf16.mxu0 0
        %655 = vmatpush1.bf16.msra.mxu0 0
        %656 = vmatprep.subr.bf16.mxu0 0
        %657 = vmatpush1.bf16.msra.mxu0 0
        %658 = vmatprep.subr.bf16.mxu0 0
        %659 = vmatpush1.bf16.msra.mxu0 0
        %660 = vmatprep.mubr.bf16.mxu0 0
        %661 = vmatmul.mubr.bf16.gmra.mrb[0].mxu0 %v556
        %v662 = vpop.f32.mrb[0].mxu0
        %v663 = vadd.f32 %v578, %v662
        %v664 = vpop.f32.mrb[0].mxu0
        %v665 = vpop.f32.mrb[0].mxu0
        %v666 = vadd.f32 %v578, %v665
        %v667 = vpop.f32.mrb[0].mxu0
        %668 = vdwg.mxu0
        %v669 = vpack.c.bf16 %v666, %v663
        %v671 = vunpack.c.l.b16 %v669
        %v672 = vunpack.c.h.b16 %v669
        %v673 = vpack.c.b16 %v671, %v671
        %v674 = vpack.c.b16 %v672, %v672
        %677 = vst [vmem:[%s372] sm:$0xf] %v673
        %678 = vst [vmem:[%s372 + $0x4] sm:$0xf] %v674
        %s679 = sand.u32 %s209, 1
        %s680 = scalar_lea.sflag [#allocation5], %s679
        %s681 = sand.u32 %s209, 1
        %s682 = smul.addr %s681, 8
        %s683 = scalar_lea.vmem [#allocation9], %s682
        // Predicated region
        $region65: #{tpu_custom_call.1} parent=47 // pred_check
          %p684 = pneg %p219
        $region66: #{tpu_custom_call.1} parent=47 // pred_check_branch
          %686 = sbr.rel (%p684) target = $region68
        $region67: #{tpu_custom_call.1} parent=47 // pred_region
          %s687 = smul.u32 2, %s29
          %s689 = ssub.s32 128, 128
          %690 = vsyncadd %s680, %s689
          %s691 = smul.addr %s687, 2
          %s692 = sadd.s32 %s30, %s691
          %s693 = smul.addr %s692, 64
          %s694 = scalar_lea.hbm %s7, %s693
          %s695 = sshll.u32 %s683, 4
          %s696 = int_to_ptr.vmem [resolvable:$true] %s695
          %701 = dma.vmem_to_hbm [thread:$0]  %s696, 128, %s694, %s680, 64, 128, 4
        $region68: #{tpu_custom_call.1} parent=47 // pred_fallthru
          _
      $region48: #{tpu_custom_call.1} parent=5 // pred_fallthru
        _
      %p702 = scmp.le.s32.totalorder 2, %s20
      // Predicated region
      $region69: #{tpu_custom_call.1} parent=5 // pred_check
        %p703 = pneg %p702
      $region70: #{tpu_custom_call.1} parent=5 // pred_check_branch
        %705 = sbr.rel (%p703) target = $region72
      $region71: #{tpu_custom_call.1} parent=5 // pred_region
        %s706 = ssub.s32 %s20, 2
        // Predicated region
        $region73: #{tpu_custom_call.1} parent=71 // pred_check
          %p707 = pneg %p225
        $region74: #{tpu_custom_call.1} parent=71 // pred_check_branch
          %709 = sbr.rel (%p707) target = $region76
        $region75: #{tpu_custom_call.1} parent=71 // pred_region
          %s710 = sand.u32 %s210, 1
          %s711 = scalar_lea.sflag [#allocation5], %s710
          %s712 = sand.u32 %s210, 1
          %s713 = smul.addr %s712, 8
          %s714 = scalar_lea.vmem [#allocation9], %s713
          %715 = dma.done %s711, 128
        $region76: #{tpu_custom_call.1} parent=71 // pred_fallthru
          _
      $region72: #{tpu_custom_call.1} parent=5 // pred_fallthru
        _
    $region6: #{tpu_custom_call.1} parent=1 // loop_footer
      %s24 = sadd.s32 1, %s20
    $region7: #{tpu_custom_call.1} parent=1 // loop_footer_branch
      %19 = sbr.rel target = $region3
    $region8: #{tpu_custom_call.1} parent=1 // loop_exit
      _
    %716 = vsyncpa [#allocation4], 1
    %s717 = scalar_lea.sflag [#allocation4], 1
    %718 = vsyncpa %s717, 1
    %719 = vsyncpa [#allocation7], 1
    %720 = vsyncpa [#allocation5], 1
    %s721 = scalar_lea.sflag [#allocation5], 1
    %722 = vsyncpa %s721, 1

</llo_original>
